<compile_context>
chip_gen: v6e
topology: v6e:2x2x1
jax: 0.10.0
libtpu: 0.0.40
codegen_flags: <defaults>
</compile_context>

<pallas_src>
import jax
import jax.numpy as jnp
from jax.experimental import pallas as pl
from jax.experimental.pallas import tpu as pltpu


def _alpha_kernel(log_alpha_ref, alpha_ref):
    # Single EUP transcendental on a (1, 1) VMEM tile.
    alpha_ref[...] = jnp.exp(log_alpha_ref[...])


def alpha_forward(log_alpha_scalar: jax.Array) -> jax.Array:
    """Equivalent of Alpha.forward(): returns exp(log_alpha) as a 0-d f32.

    NOTE: if alpha feeds another Pallas kernel, prefer passing log_alpha via
    scalar prefetch / SMEM to that kernel and computing exp there (free filler
    under the real bottleneck) instead of calling this standalone kernel.
    """
    # Avoid a redundant convert op when the parameter is already f32.
    if log_alpha_scalar.dtype != jnp.float32:
        log_alpha_scalar = log_alpha_scalar.astype(jnp.float32)

    # Lift the 0-d parameter to a (1, 1) tile (sublane, lane) for the kernel.
    log_alpha_2d = jnp.reshape(log_alpha_scalar, (1, 1))

    # Gridless launch: whole-array VMEM blocks, no grid loop, no index maps.
    alpha_2d = pl.pallas_call(
        _alpha_kernel,
        out_shape=jax.ShapeDtypeStruct((1, 1), jnp.float32),
        in_specs=[pl.BlockSpec(memory_space=pltpu.MemorySpace.VMEM)],
        out_specs=pl.BlockSpec(memory_space=pltpu.MemorySpace.VMEM),
    )(log_alpha_2d)

    # Reshape (not slice) back to a 0-d scalar, matching torch.exp(param).
    return jnp.reshape(alpha_2d, ())


if __name__ == "__main__":
    # Deterministic parameter init, matching nn.Parameter(torch.tensor(1.0)).
    # (PRNGKey is built per harness convention; __init__ is deterministic.)
    _ = jax.random.PRNGKey(0)
    log_alpha = jnp.asarray(1.0, dtype=jnp.float32)

    alpha = alpha_forward(log_alpha)
    alpha = jax.block_until_ready(alpha)

    expected = jnp.exp(jnp.float32(1.0))
    assert alpha.shape == ()
    assert alpha.dtype == jnp.float32
    assert jnp.allclose(alpha, expected, rtol=1e-6, atol=1e-6)

    print("KERNEL_OK")
</pallas_src>

<mosaic_0001>
module attributes {stable_mosaic.version = 11 : i64} {
  func.func @_alpha_kernel(%arg0: memref<1x1xf32, #tpu.memory_space<vmem>>, %arg1: memref<1x1xf32, #tpu.memory_space<vmem>>) attributes {dimension_semantics = [], scalar_prefetch = 0 : i64, scratch_operands = 0 : i64, tpu.core_type = #tpu.core_type<tc>} {
    %c0 = arith.constant 0 : index
    %c0_0 = arith.constant 0 : index
    %0 = vector.load %arg0[%c0, %c0_0] : memref<1x1xf32, #tpu.memory_space<vmem>>, vector<1x1xf32>
    %1 = math.exp %0 : vector<1x1xf32>
    %c0_1 = arith.constant 0 : index
    %c0_2 = arith.constant 0 : index
    %2 = vector.load %arg1[%c0_1, %c0_2] : memref<1x1xf32, #tpu.memory_space<vmem>>, vector<1x1xf32>
    tpu.vector_store %arg1[%c0_1, %c0_2], %1 {strides = array<i32>} : memref<1x1xf32, #tpu.memory_space<vmem>>, vector<1x1xf32>,
    return
  }
}

</mosaic_0001>

<llo_original>
// kernel: tpu_custom_call.1
$region0: #{tpu_custom_call.1}
  #allocation0 [shape = 'u32[]', space=smem, size = 0x4, offset = 0x4, fixed_abs, tag = 'smem constant byte address 0x4 - core index']
  #allocation1 [shape = 'u32[144,128]{1,0:T(1,128)}', space=vmem, size = 0x12000, scoped, tag = 'internal scratch']
  #allocation2 [shape = 'f32[1,1]{1,0:T(1,128)S(1)}', space=vmem, size = 0x200, scoped, tag = 'scoped memory for tpu_custom_call.1']
  %s0 = inlined_call_operand.<no memory space> [shape: f32[1,1], index: 0, kind: input, shape index: {}]
  %s1 = inlined_call_operand.hbm [shape: f32[1,1], index: 1, kind: output, shape index: {}]
  %s2 = sld [smem:[#allocation0]]
  $region14: #{tpu_custom_call.1} parent=0
    _
  %s4 = ssub.s32 1, %s2
  %s5 = scalar_select 0, %s4, %s2
  %v6 = vstv %s0
  %7 = vst [vmem:[#allocation2] sm:$0x1] %v6
  $region1: #{tpu_custom_call.1} parent=0
    #allocation3 [shape = 'u8[512]{0}', space=vmem, size = 0x400, scoped, tag = 'output window, operand 0, single buffered']
    #allocation4 [shape = 's32[1]{0}', space=sflag, size = 0x4, scoped, tag = 'scoped memory for tpu_custom_call.1']
    %8 = vsyncpa [#allocation4], 0
    // Predicated region
    $region2: #{tpu_custom_call.1} parent=1 // pred_check
      _
    $region3: #{tpu_custom_call.1} parent=1 // pred_check_branch
      %10 = sbr.rel (0) target = $region5
    $region4: #{tpu_custom_call.1} parent=1 // pred_region
      _
    $region5: #{tpu_custom_call.1} parent=1 // pred_fallthru
      _
    %v11 = vld [vmem:[#allocation2] sm:$0x1]
    %v12 = vmul.f32 %v11, 1.442695
    %v13 = vpow.pop %v12
    %vm14 = vcmask 0
    %15 = vst.msk [vmem:[#allocation3] sm:$0x1] %vm14, %v13
    // Predicated region
    $region6: #{tpu_custom_call.1} parent=1 // pred_check
      _
    $region7: #{tpu_custom_call.1} parent=1 // pred_check_branch
      %17 = sbr.rel (0) target = $region9
    $region8: #{tpu_custom_call.1} parent=1 // pred_region
      %s19 = ssub.s32 16, 16
      %20 = vsyncadd [#allocation4], %s19
      %s22 = sshll.u32 [#allocation3], 4
      %s23 = int_to_ptr.vmem [resolvable:$true] %s22
      %25 = dma.vmem_to_hbm [thread:$0]  %s23, 16, %s1, [#allocation4]
    $region9: #{tpu_custom_call.1} parent=1 // pred_fallthru
      _
    // Predicated region
    $region10: #{tpu_custom_call.1} parent=1 // pred_check
      _
    $region11: #{tpu_custom_call.1} parent=1 // pred_check_branch
      %27 = sbr.rel (0) target = $region13
    $region12: #{tpu_custom_call.1} parent=1 // pred_region
      %28 = dma.done [#allocation4], 16
    $region13: #{tpu_custom_call.1} parent=1 // pred_fallthru
      _
    %29 = vsyncpa [#allocation4], 1

</llo_original>
